<compile_context>
chip_gen: v6e
topology: v6e:2x2x1
jax: 0.10.0
libtpu: 0.0.40
codegen_flags: <defaults>
</compile_context>

<pallas_src>
import functools

import jax
import jax.numpy as jnp
from jax.experimental import pallas as pl
from jax.experimental.pallas import tpu as pltpu


def _groupnorm_kernel(x_ref, w_ref, b_ref, o_ref, *, eps, inv_n, inv_nm1,
                      num_groups):
    # x_ref / o_ref : (G, R, 128) lane-dense rows for one sample.
    # w_ref / b_ref : (G, R, 1)   per-row affine params (channel value repeated
    #                 once per 128-lane row of that channel).
    for g in range(num_groups):          # static unroll; G is small & static
        x = x_ref[g].astype(jnp.float32)                    # (R, 128)

        # Single sweep: sum and sum-of-squares together (f32 accumulation;
        # zero padding in the last spatial rows contributes nothing).
        s = jnp.sum(x)
        ss = jnp.sum(x * x)

        mean = s * inv_n
        # Unbiased variance (n-1): matches torch.Tensor.var()'s default, which
        # is what the reference module computes (NOT nn.GroupNorm's /n).
        var = (ss - s * mean) * inv_nm1
        inv_std = jax.lax.rsqrt(var + eps)                  # EUP op

        # Fused affine: y = x * a + c  (one mul + one add per element).
        a = w_ref[g] * inv_std                              # (R, 1)
        c = b_ref[g] - mean * a                             # (R, 1)
        o_ref[g] = (x * a + c).astype(o_ref.dtype)


def group_norm(x, weight, bias, num_groups=4, eps=1e-5):
    """x: (N, C, H, W); weight, bias: (1, C, 1, 1) — same as the PyTorch module."""
    N, C, H, W = x.shape
    G = num_groups
    assert C % G == 0
    Cg = C // G
    HW = H * W
    HWp = ((HW + 127) // 128) * 128        # pad spatial axis to lane width
    rows_per_ch = HWp // 128               # 128-lane rows per channel
    R = Cg * rows_per_ch                   # 128-lane rows per group
    n_valid = Cg * HW                      # true element count per group

    # Lane-dense re-layout: (N, G, R, 128). Zero padding is benign for the
    # stats (adds 0 to sum / sum-of-squares); padded outputs are sliced away.
    # When HW is already a multiple of 128 these reshapes are zero-copy views.
    xg = x.reshape(N, G, Cg, HW)
    if HWp != HW:
        xg = jnp.pad(xg, ((0, 0), (0, 0), (0, 0), (0, HWp - HW)))
    x_rows = xg.reshape(N, G, R, 128)

    # Pre-expand per-channel params to per-row (channel value repeated once per
    # 128-lane row of that channel): kernel affine is a clean full-vreg FMA.
    w_rows = jnp.repeat(weight.reshape(G, Cg).astype(jnp.float32),
                        rows_per_ch, axis=1).reshape(G, R, 1)
    b_rows = jnp.repeat(bias.reshape(G, Cg).astype(jnp.float32),
                        rows_per_ch, axis=1).reshape(G, R, 1)

    kernel = functools.partial(
        _groupnorm_kernel,
        eps=float(eps),
        inv_n=1.0 / n_valid,
        inv_nm1=1.0 / max(n_valid - 1, 1),
        num_groups=G,
    )

    itemsize = jnp.dtype(x.dtype).itemsize
    block_bytes = G * R * 128 * itemsize
    # in + out double-buffered plus params and slack; capped so it stays within
    # v7x's 64 MiB physical VMEM.
    # TODO(synk): very large per-sample slabs (block > ~12 MiB) would need an
    # extra spatial-chunk grid axis with a two-pass (stats, then normalize)
    # scheme; not required at these sizes.
    vmem_limit = int(min(max(4 * block_bytes + (4 << 20), 32 << 20), 64 << 20))

    cost = pl.CostEstimate(
        flops=5 * N * G * R * 128,
        transcendentals=N * G,
        bytes_accessed=2 * N * block_bytes + 2 * G * R * 4,
    )

    out = pl.pallas_call(
        kernel,
        out_shape=jax.ShapeDtypeStruct((N, G, R, 128), x.dtype),
        grid_spec=pltpu.PrefetchScalarGridSpec(
            num_scalar_prefetch=0,
            grid=(N,),
            in_specs=[
                pl.BlockSpec((pl.Squeezed(), G, R, 128),
                             lambda n: (n, 0, 0, 0)),
                pl.BlockSpec((G, R, 1), lambda n: (0, 0, 0)),
                pl.BlockSpec((G, R, 1), lambda n: (0, 0, 0)),
            ],
            out_specs=pl.BlockSpec((pl.Squeezed(), G, R, 128),
                                   lambda n: (n, 0, 0, 0)),
        ),
        compiler_params=pltpu.CompilerParams(
            dimension_semantics=("parallel",),
            vmem_limit_bytes=vmem_limit,
        ),
        cost_estimate=cost,
    )(x_rows, w_rows, b_rows)

    out = out.reshape(N, G, Cg, HWp)
    if HWp != HW:
        out = out[..., :HW]
    return out.reshape(N, C, H, W)


def group_norm_ref(x, weight, bias, num_groups=4, eps=1e-5):
    """Pure-JAX reference mirroring the PyTorch forward (unbiased var)."""
    N, C, H, W = x.shape
    G = num_groups
    xv = x.reshape(N, G, -1).astype(jnp.float32)
    mean = xv.mean(-1, keepdims=True)
    var = xv.var(-1, keepdims=True, ddof=1)
    xn = (xv - mean) / jnp.sqrt(var + eps)
    xn = xn.reshape(N, C, H, W)
    return xn * weight + bias


if __name__ == "__main__":
    key = jax.random.PRNGKey(0)
    N, C, H, W = 2, 8, 16, 16
    num_groups = 4
    eps = 1e-5

    kx, kw, kb = jax.random.split(key, 3)
    x = jax.random.normal(kx, (N, C, H, W), dtype=jnp.float32)

    # 1) Parameters exactly as the module's __init__: ones / zeros, (1, C, 1, 1).
    weight = jnp.ones((1, C, 1, 1), dtype=jnp.float32)
    bias = jnp.zeros((1, C, 1, 1), dtype=jnp.float32)

    y = group_norm(x, weight, bias, num_groups=num_groups, eps=eps)
    y = jax.block_until_ready(y)
    y_ref = group_norm_ref(x, weight, bias, num_groups=num_groups, eps=eps)
    assert jnp.allclose(y, y_ref, atol=2e-5, rtol=2e-5), "mismatch vs reference"

    # 2) Non-trivial affine parameters (exercise the fused scale/shift path).
    weight2 = jax.random.normal(kw, (1, C, 1, 1), dtype=jnp.float32)
    bias2 = jax.random.normal(kb, (1, C, 1, 1), dtype=jnp.float32)

    y2 = group_norm(x, weight2, bias2, num_groups=num_groups, eps=eps)
    y2 = jax.block_until_ready(y2)
    y2_ref = group_norm_ref(x, weight2, bias2, num_groups=num_groups, eps=eps)
    assert jnp.allclose(y2, y2_ref, atol=2e-5, rtol=2e-5), "mismatch (affine)"

    print("KERNEL_OK")
</pallas_src>

<mosaic_0001>
module attributes {stable_mosaic.version = 11 : i64} {
  func.func @_groupnorm_kernel(%arg0: i32, %arg1: memref<1x4x4x128xf32, #tpu.memory_space<vmem>>, %arg2: memref<4x4x1xf32, #tpu.memory_space<vmem>>, %arg3: memref<4x4x1xf32, #tpu.memory_space<vmem>>, %arg4: memref<1x4x4x128xf32, #tpu.memory_space<vmem>>) attributes {dimension_semantics = [#tpu.dimension_semantics<parallel>], iteration_bounds = array<i64: 2>, scalar_prefetch = 0 : i64, scratch_operands = 0 : i64, tpu.core_type = #tpu.core_type<tc>, window_params = [{transform_indices = @transform_0, window_bounds = array<i64: 1, 4, 4, 128>}, {pipeline_mode = #tpu.pipeline_mode<synchronous>, transform_indices = @transform_1, window_bounds = array<i64: 4, 4, 1>}, {pipeline_mode = #tpu.pipeline_mode<synchronous>, transform_indices = @transform_2, window_bounds = array<i64: 4, 4, 1>}, {transform_indices = @transform_3, window_bounds = array<i64: 1, 4, 4, 128>}]} {
    %c0 = arith.constant 0 : index
    %c0_0 = arith.constant 0 : index
    %c0_1 = arith.constant 0 : index
    %c0_2 = arith.constant 0 : index
    %0 = vector.load %arg1[%c0, %c0_0, %c0_1, %c0_2] : memref<1x4x4x128xf32, #tpu.memory_space<vmem>>, vector<1x1x4x128xf32>
    %1 = vector.shape_cast %0 : vector<1x1x4x128xf32> to vector<4x128xf32>
    %2 = vector.shape_cast %1 : vector<4x128xf32> to vector<1x4x128xf32>
    %cst = arith.constant dense<0.000000e+00> : vector<1xf32>
    %3 = vector.multi_reduction <add>, %2, %cst [1, 2] : vector<1x4x128xf32> to vector<1xf32>
    %4 = vector.shape_cast %3 : vector<1xf32> to vector<1x1x1xf32>
    %5 = vector.extract %4[0, 0, 0] : f32 from vector<1x1x1xf32>
    %6 = arith.mulf %1, %1 : vector<4x128xf32>
    %7 = vector.shape_cast %6 : vector<4x128xf32> to vector<1x4x128xf32>
    %cst_3 = arith.constant dense<0.000000e+00> : vector<1xf32>
    %8 = vector.multi_reduction <add>, %7, %cst_3 [1, 2] : vector<1x4x128xf32> to vector<1xf32>
    %9 = vector.shape_cast %8 : vector<1xf32> to vector<1x1x1xf32>
    %10 = vector.extract %9[0, 0, 0] : f32 from vector<1x1x1xf32>
    %cst_4 = arith.constant 0.001953125 : f32
    %11 = arith.mulf %5, %cst_4 : f32
    %12 = arith.mulf %5, %11 : f32
    %13 = arith.subf %10, %12 : f32
    %cst_5 = arith.constant 0.00195694715 : f32
    %14 = arith.mulf %13, %cst_5 : f32
    %cst_6 = arith.constant 9.99999974E-6 : f32
    %15 = arith.addf %14, %cst_6 : f32
    %16 = math.rsqrt %15 : f32
    %c0_7 = arith.constant 0 : index
    %c0_8 = arith.constant 0 : index
    %c0_9 = arith.constant 0 : index
    %17 = vector.load %arg2[%c0_7, %c0_8, %c0_9] : memref<4x4x1xf32, #tpu.memory_space<vmem>>, vector<1x4x1xf32>
    %18 = vector.shape_cast %17 : vector<1x4x1xf32> to vector<4x1xf32>
    %19 = vector.broadcast %16 : f32 to vector<4x1xf32>
    %20 = arith.mulf %18, %19 : vector<4x1xf32>
    %c0_10 = arith.constant 0 : index
    %c0_11 = arith.constant 0 : index
    %c0_12 = arith.constant 0 : index
    %21 = vector.load %arg3[%c0_10, %c0_11, %c0_12] : memref<4x4x1xf32, #tpu.memory_space<vmem>>, vector<1x4x1xf32>
    %22 = vector.shape_cast %21 : vector<1x4x1xf32> to vector<4x1xf32>
    %23 = vector.broadcast %11 : f32 to vector<4x1xf32>
    %24 = arith.mulf %23, %20 : vector<4x1xf32>
    %25 = arith.subf %22, %24 : vector<4x1xf32>
    %26 = vector.broadcast %20 : vector<4x1xf32> to vector<4x128xf32>
    %27 = arith.mulf %1, %26 : vector<4x128xf32>
    %28 = vector.broadcast %25 : vector<4x1xf32> to vector<4x128xf32>
    %29 = arith.addf %27, %28 : vector<4x128xf32>
    %c0_13 = arith.constant 0 : index
    %c0_14 = arith.constant 0 : index
    %c0_15 = arith.constant 0 : index
    %c0_16 = arith.constant 0 : index
    %30 = vector.load %arg4[%c0_13, %c0_14, %c0_15, %c0_16] : memref<1x4x4x128xf32, #tpu.memory_space<vmem>>, vector<1x1x4x128xf32>
    %31 = vector.shape_cast %30 : vector<1x1x4x128xf32> to vector<4x128xf32>
    %32 = vector.shape_cast %29 : vector<4x128xf32> to vector<1x1x4x128xf32>
    tpu.vector_store %arg4[%c0_13, %c0_14, %c0_15, %c0_16], %32 {strides = array<i32>} : memref<1x4x4x128xf32, #tpu.memory_space<vmem>>, vector<1x1x4x128xf32>,
    %c0_17 = arith.constant 0 : index
    %c1 = arith.constant 1 : index
    %c0_18 = arith.constant 0 : index
    %c0_19 = arith.constant 0 : index
    %33 = vector.load %arg1[%c0_17, %c1, %c0_18, %c0_19] : memref<1x4x4x128xf32, #tpu.memory_space<vmem>>, vector<1x1x4x128xf32>
    %34 = vector.shape_cast %33 : vector<1x1x4x128xf32> to vector<4x128xf32>
    %35 = vector.shape_cast %34 : vector<4x128xf32> to vector<1x4x128xf32>
    %cst_20 = arith.constant dense<0.000000e+00> : vector<1xf32>
    %36 = vector.multi_reduction <add>, %35, %cst_20 [1, 2] : vector<1x4x128xf32> to vector<1xf32>
    %37 = vector.shape_cast %36 : vector<1xf32> to vector<1x1x1xf32>
    %38 = vector.extract %37[0, 0, 0] : f32 from vector<1x1x1xf32>
    %39 = arith.mulf %34, %34 : vector<4x128xf32>
    %40 = vector.shape_cast %39 : vector<4x128xf32> to vector<1x4x128xf32>
    %cst_21 = arith.constant dense<0.000000e+00> : vector<1xf32>
    %41 = vector.multi_reduction <add>, %40, %cst_21 [1, 2] : vector<1x4x128xf32> to vector<1xf32>
    %42 = vector.shape_cast %41 : vector<1xf32> to vector<1x1x1xf32>
    %43 = vector.extract %42[0, 0, 0] : f32 from vector<1x1x1xf32>
    %cst_22 = arith.constant 0.001953125 : f32
    %44 = arith.mulf %38, %cst_22 : f32
    %45 = arith.mulf %38, %44 : f32
    %46 = arith.subf %43, %45 : f32
    %cst_23 = arith.constant 0.00195694715 : f32
    %47 = arith.mulf %46, %cst_23 : f32
    %cst_24 = arith.constant 9.99999974E-6 : f32
    %48 = arith.addf %47, %cst_24 : f32
    %49 = math.rsqrt %48 : f32
    %c1_25 = arith.constant 1 : index
    %c0_26 = arith.constant 0 : index
    %c0_27 = arith.constant 0 : index
    %50 = vector.load %arg2[%c1_25, %c0_26, %c0_27] : memref<4x4x1xf32, #tpu.memory_space<vmem>>, vector<1x4x1xf32>
    %51 = vector.shape_cast %50 : vector<1x4x1xf32> to vector<4x1xf32>
    %52 = vector.broadcast %49 : f32 to vector<4x1xf32>
    %53 = arith.mulf %51, %52 : vector<4x1xf32>
    %c1_28 = arith.constant 1 : index
    %c0_29 = arith.constant 0 : index
    %c0_30 = arith.constant 0 : index
    %54 = vector.load %arg3[%c1_28, %c0_29, %c0_30] : memref<4x4x1xf32, #tpu.memory_space<vmem>>, vector<1x4x1xf32>
    %55 = vector.shape_cast %54 : vector<1x4x1xf32> to vector<4x1xf32>
    %56 = vector.broadcast %44 : f32 to vector<4x1xf32>
    %57 = arith.mulf %56, %53 : vector<4x1xf32>
    %58 = arith.subf %55, %57 : vector<4x1xf32>
    %59 = vector.broadcast %53 : vector<4x1xf32> to vector<4x128xf32>
    %60 = arith.mulf %34, %59 : vector<4x128xf32>
    %61 = vector.broadcast %58 : vector<4x1xf32> to vector<4x128xf32>
    %62 = arith.addf %60, %61 : vector<4x128xf32>
    %c0_31 = arith.constant 0 : index
    %c1_32 = arith.constant 1 : index
    %c0_33 = arith.constant 0 : index
    %c0_34 = arith.constant 0 : index
    %63 = vector.load %arg4[%c0_31, %c1_32, %c0_33, %c0_34] : memref<1x4x4x128xf32, #tpu.memory_space<vmem>>, vector<1x1x4x128xf32>
    %64 = vector.shape_cast %63 : vector<1x1x4x128xf32> to vector<4x128xf32>
    %65 = vector.shape_cast %62 : vector<4x128xf32> to vector<1x1x4x128xf32>
    tpu.vector_store %arg4[%c0_31, %c1_32, %c0_33, %c0_34], %65 {strides = array<i32>} : memref<1x4x4x128xf32, #tpu.memory_space<vmem>>, vector<1x1x4x128xf32>,
    %c0_35 = arith.constant 0 : index
    %c2 = arith.constant 2 : index
    %c0_36 = arith.constant 0 : index
    %c0_37 = arith.constant 0 : index
    %66 = vector.load %arg1[%c0_35, %c2, %c0_36, %c0_37] : memref<1x4x4x128xf32, #tpu.memory_space<vmem>>, vector<1x1x4x128xf32>
    %67 = vector.shape_cast %66 : vector<1x1x4x128xf32> to vector<4x128xf32>
    %68 = vector.shape_cast %67 : vector<4x128xf32> to vector<1x4x128xf32>
    %cst_38 = arith.constant dense<0.000000e+00> : vector<1xf32>
    %69 = vector.multi_reduction <add>, %68, %cst_38 [1, 2] : vector<1x4x128xf32> to vector<1xf32>
    %70 = vector.shape_cast %69 : vector<1xf32> to vector<1x1x1xf32>
    %71 = vector.extract %70[0, 0, 0] : f32 from vector<1x1x1xf32>
    %72 = arith.mulf %67, %67 : vector<4x128xf32>
    %73 = vector.shape_cast %72 : vector<4x128xf32> to vector<1x4x128xf32>
    %cst_39 = arith.constant dense<0.000000e+00> : vector<1xf32>
    %74 = vector.multi_reduction <add>, %73, %cst_39 [1, 2] : vector<1x4x128xf32> to vector<1xf32>
    %75 = vector.shape_cast %74 : vector<1xf32> to vector<1x1x1xf32>
    %76 = vector.extract %75[0, 0, 0] : f32 from vector<1x1x1xf32>
    %cst_40 = arith.constant 0.001953125 : f32
    %77 = arith.mulf %71, %cst_40 : f32
    %78 = arith.mulf %71, %77 : f32
    %79 = arith.subf %76, %78 : f32
    %cst_41 = arith.constant 0.00195694715 : f32
    %80 = arith.mulf %79, %cst_41 : f32
    %cst_42 = arith.constant 9.99999974E-6 : f32
    %81 = arith.addf %80, %cst_42 : f32
    %82 = math.rsqrt %81 : f32
    %c2_43 = arith.constant 2 : index
    %c0_44 = arith.constant 0 : index
    %c0_45 = arith.constant 0 : index
    %83 = vector.load %arg2[%c2_43, %c0_44, %c0_45] : memref<4x4x1xf32, #tpu.memory_space<vmem>>, vector<1x4x1xf32>
    %84 = vector.shape_cast %83 : vector<1x4x1xf32> to vector<4x1xf32>
    %85 = vector.broadcast %82 : f32 to vector<4x1xf32>
    %86 = arith.mulf %84, %85 : vector<4x1xf32>
    %c2_46 = arith.constant 2 : index
    %c0_47 = arith.constant 0 : index
    %c0_48 = arith.constant 0 : index
    %87 = vector.load %arg3[%c2_46, %c0_47, %c0_48] : memref<4x4x1xf32, #tpu.memory_space<vmem>>, vector<1x4x1xf32>
    %88 = vector.shape_cast %87 : vector<1x4x1xf32> to vector<4x1xf32>
    %89 = vector.broadcast %77 : f32 to vector<4x1xf32>
    %90 = arith.mulf %89, %86 : vector<4x1xf32>
    %91 = arith.subf %88, %90 : vector<4x1xf32>
    %92 = vector.broadcast %86 : vector<4x1xf32> to vector<4x128xf32>
    %93 = arith.mulf %67, %92 : vector<4x128xf32>
    %94 = vector.broadcast %91 : vector<4x1xf32> to vector<4x128xf32>
    %95 = arith.addf %93, %94 : vector<4x128xf32>
    %c0_49 = arith.constant 0 : index
    %c2_50 = arith.constant 2 : index
    %c0_51 = arith.constant 0 : index
    %c0_52 = arith.constant 0 : index
    %96 = vector.load %arg4[%c0_49, %c2_50, %c0_51, %c0_52] : memref<1x4x4x128xf32, #tpu.memory_space<vmem>>, vector<1x1x4x128xf32>
    %97 = vector.shape_cast %96 : vector<1x1x4x128xf32> to vector<4x128xf32>
    %98 = vector.shape_cast %95 : vector<4x128xf32> to vector<1x1x4x128xf32>
    tpu.vector_store %arg4[%c0_49, %c2_50, %c0_51, %c0_52], %98 {strides = array<i32>} : memref<1x4x4x128xf32, #tpu.memory_space<vmem>>, vector<1x1x4x128xf32>,
    %c0_53 = arith.constant 0 : index
    %c3 = arith.constant 3 : index
    %c0_54 = arith.constant 0 : index
    %c0_55 = arith.constant 0 : index
    %99 = vector.load %arg1[%c0_53, %c3, %c0_54, %c0_55] : memref<1x4x4x128xf32, #tpu.memory_space<vmem>>, vector<1x1x4x128xf32>
    %100 = vector.shape_cast %99 : vector<1x1x4x128xf32> to vector<4x128xf32>
    %101 = vector.shape_cast %100 : vector<4x128xf32> to vector<1x4x128xf32>
    %cst_56 = arith.constant dense<0.000000e+00> : vector<1xf32>
    %102 = vector.multi_reduction <add>, %101, %cst_56 [1, 2] : vector<1x4x128xf32> to vector<1xf32>
    %103 = vector.shape_cast %102 : vector<1xf32> to vector<1x1x1xf32>
    %104 = vector.extract %103[0, 0, 0] : f32 from vector<1x1x1xf32>
    %105 = arith.mulf %100, %100 : vector<4x128xf32>
    %106 = vector.shape_cast %105 : vector<4x128xf32> to vector<1x4x128xf32>
    %cst_57 = arith.constant dense<0.000000e+00> : vector<1xf32>
    %107 = vector.multi_reduction <add>, %106, %cst_57 [1, 2] : vector<1x4x128xf32> to vector<1xf32>
    %108 = vector.shape_cast %107 : vector<1xf32> to vector<1x1x1xf32>
    %109 = vector.extract %108[0, 0, 0] : f32 from vector<1x1x1xf32>
    %cst_58 = arith.constant 0.001953125 : f32
    %110 = arith.mulf %104, %cst_58 : f32
    %111 = arith.mulf %104, %110 : f32
    %112 = arith.subf %109, %111 : f32
    %cst_59 = arith.constant 0.00195694715 : f32
    %113 = arith.mulf %112, %cst_59 : f32
    %cst_60 = arith.constant 9.99999974E-6 : f32
    %114 = arith.addf %113, %cst_60 : f32
    %115 = math.rsqrt %114 : f32
    %c3_61 = arith.constant 3 : index
    %c0_62 = arith.constant 0 : index
    %c0_63 = arith.constant 0 : index
    %116 = vector.load %arg2[%c3_61, %c0_62, %c0_63] : memref<4x4x1xf32, #tpu.memory_space<vmem>>, vector<1x4x1xf32>
    %117 = vector.shape_cast %116 : vector<1x4x1xf32> to vector<4x1xf32>
    %118 = vector.broadcast %115 : f32 to vector<4x1xf32>
    %119 = arith.mulf %117, %118 : vector<4x1xf32>
    %c3_64 = arith.constant 3 : index
    %c0_65 = arith.constant 0 : index
    %c0_66 = arith.constant 0 : index
    %120 = vector.load %arg3[%c3_64, %c0_65, %c0_66] : memref<4x4x1xf32, #tpu.memory_space<vmem>>, vector<1x4x1xf32>
    %121 = vector.shape_cast %120 : vector<1x4x1xf32> to vector<4x1xf32>
    %122 = vector.broadcast %110 : f32 to vector<4x1xf32>
    %123 = arith.mulf %122, %119 : vector<4x1xf32>
    %124 = arith.subf %121, %123 : vector<4x1xf32>
    %125 = vector.broadcast %119 : vector<4x1xf32> to vector<4x128xf32>
    %126 = arith.mulf %100, %125 : vector<4x128xf32>
    %127 = vector.broadcast %124 : vector<4x1xf32> to vector<4x128xf32>
    %128 = arith.addf %126, %127 : vector<4x128xf32>
    %c0_67 = arith.constant 0 : index
    %c3_68 = arith.constant 3 : index
    %c0_69 = arith.constant 0 : index
    %c0_70 = arith.constant 0 : index
    %129 = vector.load %arg4[%c0_67, %c3_68, %c0_69, %c0_70] : memref<1x4x4x128xf32, #tpu.memory_space<vmem>>, vector<1x1x4x128xf32>
    %130 = vector.shape_cast %129 : vector<1x1x4x128xf32> to vector<4x128xf32>
    %131 = vector.shape_cast %128 : vector<4x128xf32> to vector<1x1x4x128xf32>
    tpu.vector_store %arg4[%c0_67, %c3_68, %c0_69, %c0_70], %131 {strides = array<i32>} : memref<1x4x4x128xf32, #tpu.memory_space<vmem>>, vector<1x1x4x128xf32>,
    return
  }
  func.func @transform_0(%arg0: i32) -> (i32, i32, i32, i32) {
    %c0_i32 = arith.constant 0 : i32
    %c0_i32_0 = arith.constant 0 : i32
    %c0_i32_1 = arith.constant 0 : i32
    %c0_i32_2 = arith.constant 0 : i32
    return %arg0, %c0_i32, %c0_i32_0, %c0_i32_1 : i32, i32, i32, i32
  }
  func.func @transform_1(%arg0: i32) -> (i32, i32, i32) {
    %c0_i32 = arith.constant 0 : i32
    %c0_i32_0 = arith.constant 0 : i32
    %c0_i32_1 = arith.constant 0 : i32
    %c0_i32_2 = arith.constant 0 : i32
    return %c0_i32, %c0_i32_0, %c0_i32_1 : i32, i32, i32
  }
  func.func @transform_2(%arg0: i32) -> (i32, i32, i32) {
    %c0_i32 = arith.constant 0 : i32
    %c0_i32_0 = arith.constant 0 : i32
    %c0_i32_1 = arith.constant 0 : i32
    %c0_i32_2 = arith.constant 0 : i32
    return %c0_i32, %c0_i32_0, %c0_i32_1 : i32, i32, i32
  }
  func.func @transform_3(%arg0: i32) -> (i32, i32, i32, i32) {
    %c0_i32 = arith.constant 0 : i32
    %c0_i32_0 = arith.constant 0 : i32
    %c0_i32_1 = arith.constant 0 : i32
    %c0_i32_2 = arith.constant 0 : i32
    return %arg0, %c0_i32, %c0_i32_0, %c0_i32_1 : i32, i32, i32, i32
  }
}

</mosaic_0001>

<llo_original>
// kernel: tpu_custom_call.1
$region0: #{tpu_custom_call.1}
  #allocation0 [shape = 'u32[]', space=smem, size = 0x4, offset = 0x4, fixed_abs, tag = 'smem constant byte address 0x4 - core index']
  #allocation1 [shape = 'u32[144,128]{1,0:T(1,128)}', space=vmem, size = 0x12000, scoped, tag = 'internal scratch']
  %s0 = inlined_call_operand.vmem [shape: f32[2,4,4,128], index: 0, kind: input, shape index: {}]
  %s1 = inlined_call_operand.vmem [shape: f32[4,4,1], index: 1, kind: input, shape index: {}]
  %s2 = inlined_call_operand.vmem [shape: f32[4,4,1], index: 2, kind: input, shape index: {}]
  %s3 = inlined_call_operand.hbm [shape: f32[2,4,4,128], index: 3, kind: output, shape index: {}]
  %s4 = sld [smem:[#allocation0]]
  $region45: #{tpu_custom_call.1} parent=0
    _
  %s6 = ssub.s32 1, %s4
  %s7 = scalar_select 0, %s6, %s4
  $region1: #{tpu_custom_call.1} parent=0
    #allocation2 [shape = 'u8[16384]{0}', space=vmem, size = 0x4000, scoped, tag = 'output window, operand 0']
    #allocation3 [shape = 's32[2]{0}', space=sflag, size = 0x8, scoped, tag = 'scoped memory for tpu_custom_call.1']
    %8 = vsyncpa [#allocation3], 0
    %s9 = scalar_lea.sflag [#allocation3], 1
    %10 = vsyncpa %s9, 0
    loop: start=0, step=1, limit=4
    $region2: #{tpu_custom_call.1} parent=1 // loop_pre_header
      _
    $region3: #{tpu_custom_call.1} parent=1 // loop_header
      %s12 = sphi 0, %s16
      %p13 = scmp.ge.s32.totalorder %s12, 4
      %s22 = sphi 0, %s24
      %s25 = sphi 0, %s22
      %s26 = sphi 0, %s25
      %s42 = sphi 0, %s26
      %s46 = sphi 0, %s46
      %s48 = sphi 0, %s46
      %s49 = sphi 0, %s48
      %s63 = sphi 0, %s49
      %s67 = sphi 0, %s67
      %s69 = sphi 0, %s67
      %s70 = sphi 0, %s69
      %s84 = sphi 0, %s70
      %s90 = sphi 0, %s92
      %s93 = sphi 0, %s90
      %s94 = sphi 0, %s93
      %s110 = sphi 0, %s94
    $region4: #{tpu_custom_call.1} parent=1 // loop_header_branch
      %15 = sbr.rel (%p13) target = $region8
    $region5: #{tpu_custom_call.1} parent=1 // loop_body
      %s17 = ssub.s32 %s12, 1
      %s18 = ssub.s32 %s12, 2
      %s19 = sadd.s32 %s12, 1
      %s20 = ssub.s32 %s12, %s19
      %p21 = scmp.eq.s32.totalorder %s20, 0
      %s23 = sadd.s32 %s22, 1
      %s24 = scalar_select %p21, %s22, %s23
      %p27 = pneg %p21
      %p28 = scmp.eq.s32.totalorder %s12, 1
      %p29 = por %p27, %p28
      %p30 = scmp.ne.s32.totalorder %s22, %s25
      %p31 = scmp.eq.s32.totalorder %s12, 0
      %p32 = por %p30, %p31
      %p33 = scmp.ne.s32.totalorder %s22, %s25
      %p34 = scmp.eq.s32.totalorder %s17, 1
      %p35 = por %p33, %p34
      %p36 = scmp.ne.s32.totalorder %s25, %s26
      %p37 = scmp.eq.s32.totalorder %s17, 0
      %p38 = por %p36, %p37
      %p39 = scmp.ne.s32.totalorder %s25, %s26
      %p40 = scmp.eq.s32.totalorder %s18, 1
      %p41 = por %p39, %p40
      %p43 = scmp.ne.s32.totalorder %s26, %s42
      %p44 = scmp.eq.s32.totalorder %s18, 0
      %p45 = por %p43, %p44
      %s47 = sadd.s32 %s46, 1
      %p50 = scmp.eq.s32.totalorder %s12, 1
      %p51 = scmp.ne.s32.totalorder %s46, %s48
      %p52 = scmp.eq.s32.totalorder %s12, 0
      %p53 = por %p51, %p52
      %p54 = scmp.ne.s32.totalorder %s46, %s48
      %p55 = scmp.eq.s32.totalorder %s17, 1
      %p56 = por %p54, %p55
      %p57 = scmp.ne.s32.totalorder %s48, %s49
      %p58 = scmp.eq.s32.totalorder %s17, 0
      %p59 = por %p57, %p58
      %p60 = scmp.ne.s32.totalorder %s48, %s49
      %p61 = scmp.eq.s32.totalorder %s18, 1
      %p62 = por %p60, %p61
      %p64 = scmp.ne.s32.totalorder %s49, %s63
      %p65 = scmp.eq.s32.totalorder %s18, 0
      %p66 = por %p64, %p65
      %s68 = sadd.s32 %s67, 1
      %p71 = scmp.eq.s32.totalorder %s12, 1
      %p72 = scmp.ne.s32.totalorder %s67, %s69
      %p73 = scmp.eq.s32.totalorder %s12, 0
      %p74 = por %p72, %p73
      %p75 = scmp.ne.s32.totalorder %s67, %s69
      %p76 = scmp.eq.s32.totalorder %s17, 1
      %p77 = por %p75, %p76
      %p78 = scmp.ne.s32.totalorder %s69, %s70
      %p79 = scmp.eq.s32.totalorder %s17, 0
      %p80 = por %p78, %p79
      %p81 = scmp.ne.s32.totalorder %s69, %s70
      %p82 = scmp.eq.s32.totalorder %s18, 1
      %p83 = por %p81, %p82
      %p85 = scmp.ne.s32.totalorder %s70, %s84
      %p86 = scmp.eq.s32.totalorder %s18, 0
      %p87 = por %p85, %p86
      %s88 = ssub.s32 %s12, %s19
      %p89 = scmp.eq.s32.totalorder %s88, 0
      %s91 = sadd.s32 %s90, 1
      %s92 = scalar_select %p89, %s90, %s91
      %p95 = pneg %p89
      %p96 = scmp.eq.s32.totalorder %s12, 1
      %p97 = por %p95, %p96
      %p98 = scmp.ne.s32.totalorder %s90, %s93
      %p99 = scmp.eq.s32.totalorder %s12, 0
      %p100 = por %p98, %p99
      %p101 = scmp.ne.s32.totalorder %s90, %s93
      %p102 = scmp.eq.s32.totalorder %s17, 1
      %p103 = por %p101, %p102
      %p104 = scmp.ne.s32.totalorder %s93, %s94
      %p105 = scmp.eq.s32.totalorder %s17, 0
      %p106 = por %p104, %p105
      %p107 = scmp.ne.s32.totalorder %s93, %s94
      %p108 = scmp.eq.s32.totalorder %s18, 1
      %p109 = por %p107, %p108
      %p111 = scmp.ne.s32.totalorder %s94, %s110
      %p112 = scmp.eq.s32.totalorder %s18, 0
      %p113 = por %p111, %p112
      %p114 = scmp.le.s32.totalorder 1, %s12
      %p115 = scmp.lt.s32.totalorder %s12, 3
      %p116 = pnand %p114, %p115
      %p117 = pneg %p116
      // Predicated region
      $region9: #{tpu_custom_call.1} parent=5 // pred_check
        _
      $region10: #{tpu_custom_call.1} parent=5 // pred_check_branch
        %119 = sbr.rel (%p116) target = $region12
      $region11: #{tpu_custom_call.1} parent=5 // pred_region
        %s120 = ssub.s32 %s12, 1
        // Predicated region
        $region13: #{tpu_custom_call.1} parent=11 // pred_check
          %p121 = pneg %p59
        $region14: #{tpu_custom_call.1} parent=11 // pred_check_branch
          %123 = sbr.rel (%p121) target = $region16
        $region15: #{tpu_custom_call.1} parent=11 // pred_region
          _
        $region16: #{tpu_custom_call.1} parent=11 // pred_fallthru
          _
        // Predicated region
        $region17: #{tpu_custom_call.1} parent=11 // pred_check
          %p124 = pneg %p80
        $region18: #{tpu_custom_call.1} parent=11 // pred_check_branch
          %126 = sbr.rel (%p124) target = $region20
        $region19: #{tpu_custom_call.1} parent=11 // pred_region
          _
        $region20: #{tpu_custom_call.1} parent=11 // pred_fallthru
          _
      $region12: #{tpu_custom_call.1} parent=5 // pred_fallthru
        _
      %p127 = scmp.lt.s32.totalorder %s12, 2
      // Predicated region
      $region21: #{tpu_custom_call.1} parent=5 // pred_check
        %p128 = pneg %p127
      $region22: #{tpu_custom_call.1} parent=5 // pred_check_branch
        %130 = sbr.rel (%p128) target = $region24
      $region23: #{tpu_custom_call.1} parent=5 // pred_region
        // Predicated region
        $region25: #{tpu_custom_call.1} parent=23 // pred_check
          %p131 = pneg %p32
        $region26: #{tpu_custom_call.1} parent=23 // pred_check_branch
          %133 = sbr.rel (%p131) target = $region28
        $region27: #{tpu_custom_call.1} parent=23 // pred_region
          %p134 = scmp.lt.s32.totalorder %s12, 1
          %s135 = scalar_select %p134, %s12, 1
          %s136 = smul.addr %s135, 4
          %s137 = smul.addr %s136, 4
          %s138 = scalar_lea.vmem %s0, %s137
        $region28: #{tpu_custom_call.1} parent=23 // pred_fallthru
          _
      $region24: #{tpu_custom_call.1} parent=5 // pred_fallthru
        _
      %p139 = scmp.le.s32.totalorder 1, %s12
      %p140 = scmp.lt.s32.totalorder %s12, 3
      %p141 = pnand %p139, %p140
      %p142 = pneg %p141
      // Predicated region
      $region29: #{tpu_custom_call.1} parent=5 // pred_check
        _
      $region30: #{tpu_custom_call.1} parent=5 // pred_check_branch
        %144 = sbr.rel (%p141) target = $region32
      $region31: #{tpu_custom_call.1} parent=5 // pred_region
        %s145 = ssub.s32 %s12, 1
        %p146 = scmp.lt.s32.totalorder %s17, 1
        %s147 = scalar_select %p146, %s17, 1
        %s148 = smul.addr %s147, 4
        %s149 = smul.addr %s148, 4
        %s150 = scalar_lea.vmem %s0, %s149
        %p151 = pneg %p38
        %p152 = pneg %p35
        %p153 = pneg %p59
        %p154 = pneg %p56
        %p155 = pneg %p80
        %p156 = pneg %p77
        %p157 = pneg %p106
        %p158 = pneg %p103
        %s159 = sand.u32 %s93, 1
        %s160 = scalar_lea.sflag [#allocation3], %s159
        %s161 = sand.u32 %s93, 1
        %s162 = smul.addr %s161, 16
        %s163 = scalar_lea.vmem [#allocation2], %s162
        %p164 = scmp.lt.s32.totalorder %s17, 1
        %s165 = scalar_select %p164, %s17, 1
        %s166 = smul.addr %s165, 4
        %s167 = smul.addr %s166, 4
        %s168 = scalar_lea.vmem %s0, %s167
        %v169 = vld [vmem:[%s168] sm:$0xf]
        %vm170 = vcmask 1043456
        %v171 = vsel %vm170, %v169, 0.0
        %172 = vadd.xlane.f32.xlu0 %v171
        %v173 = vpop.xlane.xlu0 %172
        %v174 = vrot.slane %v173, 4
        %v175 = vadd.f32 %v173, %v174
        %v176 = vrot.slane %v175, 2
        %v177 = vadd.f32 %v175, %v176
        %v178 = vrot.slane %v177, 1
        %v179 = vadd.f32 %v177, %v178
        %s180 = vtos %v179
        %v181 = vmul.f32 %v169, %v169
        %v182 = vsel %vm170, %v181, 0.0
        %183 = vadd.xlane.f32.xlu0 %v182
        %v184 = vpop.xlane.xlu0 %183
        %v185 = vrot.slane %v184, 4
        %v186 = vadd.f32 %v184, %v185
        %v187 = vrot.slane %v186, 2
        %v188 = vadd.f32 %v186, %v187
        %v189 = vrot.slane %v188, 1
        %v190 = vadd.f32 %v188, %v189
        %s191 = vtos %v190
        %s192 = smul.f32 %s180, 0.001953125
        %s193 = smul.f32 %s180, %s192
        %s194 = ssub.f32 %s191, %s193
        %s195 = smul.f32 %s194, 0.0019569471
        %s196 = sadd.f32 %s195, 1e-05
        %v197 = vstv %s196
        %v198 = vrsqrt.pop %v197
        %s199 = vtos %v198
        %v200 = vld [vmem:[%s1] sm:$0xf]
        %v201 = vstv %s199
        %v202 = vmul.f32 %v200, %v201
        %v203 = vld [vmem:[%s2] sm:$0xf]
        %v204 = vstv %s192
        %v205 = vmul.f32 %v204, %v202
        %v206 = vsub.f32 %v203, %v205
        %208 = vset.pattern.permute.xlu0 0
        %209 = vperm.xlu0 %208, %v202
        %v210 = vpop.permute.xlu0 %209
        %v212 = vmul.f32 %v169, %v210
        %214 = vset.pattern.permute.xlu0 0
        %215 = vperm.xlu0 %214, %v206
        %v216 = vpop.permute.xlu0 %215
        %v218 = vadd.f32 %v212, %v216
        %219 = vst [vmem:[%s163] sm:$0xf] %v218
        %s220 = scalar_lea.vmem %s168, 4
        %v221 = vld [vmem:[%s220] sm:$0xf]
        %v222 = vsel %vm170, %v221, 0.0
        %223 = vadd.xlane.f32.xlu0 %v222
        %v224 = vpop.xlane.xlu0 %223
        %v225 = vrot.slane %v224, 4
        %v226 = vadd.f32 %v224, %v225
        %v227 = vrot.slane %v226, 2
        %v228 = vadd.f32 %v226, %v227
        %v229 = vrot.slane %v228, 1
        %v230 = vadd.f32 %v228, %v229
        %s231 = vtos %v230
        %v232 = vmul.f32 %v221, %v221
        %v233 = vsel %vm170, %v232, 0.0
        %234 = vadd.xlane.f32.xlu0 %v233
        %v235 = vpop.xlane.xlu0 %234
        %v236 = vrot.slane %v235, 4
        %v237 = vadd.f32 %v235, %v236
        %v238 = vrot.slane %v237, 2
        %v239 = vadd.f32 %v237, %v238
        %v240 = vrot.slane %v239, 1
        %v241 = vadd.f32 %v239, %v240
        %s242 = vtos %v241
        %s243 = smul.f32 %s231, 0.001953125
        %s244 = smul.f32 %s231, %s243
        %s245 = ssub.f32 %s242, %s244
        %s246 = smul.f32 %s245, 0.0019569471
        %s247 = sadd.f32 %s246, 1e-05
        %v248 = vstv %s247
        %v249 = vrsqrt.pop %v248
        %s250 = vtos %v249
        %s251 = scalar_lea.vmem %s1, 4
        %v252 = vld [vmem:[%s251] sm:$0xf]
        %v253 = vstv %s250
        %v254 = vmul.f32 %v252, %v253
        %s255 = scalar_lea.vmem %s2, 4
        %v256 = vld [vmem:[%s255] sm:$0xf]
        %v257 = vstv %s243
        %v258 = vmul.f32 %v257, %v254
        %v259 = vsub.f32 %v256, %v258
        %261 = vset.pattern.permute.xlu0 0
        %262 = vperm.xlu0 %261, %v254
        %v263 = vpop.permute.xlu0 %262
        %v265 = vmul.f32 %v221, %v263
        %267 = vset.pattern.permute.xlu0 0
        %268 = vperm.xlu0 %267, %v259
        %v269 = vpop.permute.xlu0 %268
        %v271 = vadd.f32 %v265, %v269
        %s272 = scalar_lea.vmem %s163, 4 [#allocation2]
        %273 = vst [vmem:[%s272] sm:$0xf] %v271
        %s274 = scalar_lea.vmem %s168, 8
        %v275 = vld [vmem:[%s274] sm:$0xf]
        %v276 = vsel %vm170, %v275, 0.0
        %277 = vadd.xlane.f32.xlu0 %v276
        %v278 = vpop.xlane.xlu0 %277
        %v279 = vrot.slane %v278, 4
        %v280 = vadd.f32 %v278, %v279
        %v281 = vrot.slane %v280, 2
        %v282 = vadd.f32 %v280, %v281
        %v283 = vrot.slane %v282, 1
        %v284 = vadd.f32 %v282, %v283
        %s285 = vtos %v284
        %v286 = vmul.f32 %v275, %v275
        %v287 = vsel %vm170, %v286, 0.0
        %288 = vadd.xlane.f32.xlu0 %v287
        %v289 = vpop.xlane.xlu0 %288
        %v290 = vrot.slane %v289, 4
        %v291 = vadd.f32 %v289, %v290
        %v292 = vrot.slane %v291, 2
        %v293 = vadd.f32 %v291, %v292
        %v294 = vrot.slane %v293, 1
        %v295 = vadd.f32 %v293, %v294
        %s296 = vtos %v295
        %s297 = smul.f32 %s285, 0.001953125
        %s298 = smul.f32 %s285, %s297
        %s299 = ssub.f32 %s296, %s298
        %s300 = smul.f32 %s299, 0.0019569471
        %s301 = sadd.f32 %s300, 1e-05
        %v302 = vstv %s301
        %v303 = vrsqrt.pop %v302
        %s304 = vtos %v303
        %s305 = scalar_lea.vmem %s1, 8
        %v306 = vld [vmem:[%s305] sm:$0xf]
        %v307 = vstv %s304
        %v308 = vmul.f32 %v306, %v307
        %s309 = scalar_lea.vmem %s2, 8
        %v310 = vld [vmem:[%s309] sm:$0xf]
        %v311 = vstv %s297
        %v312 = vmul.f32 %v311, %v308
        %v313 = vsub.f32 %v310, %v312
        %315 = vset.pattern.permute.xlu0 0
        %316 = vperm.xlu0 %315, %v308
        %v317 = vpop.permute.xlu0 %316
        %v319 = vmul.f32 %v275, %v317
        %321 = vset.pattern.permute.xlu0 0
        %322 = vperm.xlu0 %321, %v313
        %v323 = vpop.permute.xlu0 %322
        %v325 = vadd.f32 %v319, %v323
        %s326 = scalar_lea.vmem %s163, 8 [#allocation2]
        %327 = vst [vmem:[%s326] sm:$0xf] %v325
        %s328 = scalar_lea.vmem %s168, 12
        %v329 = vld [vmem:[%s328] sm:$0xf]
        %v330 = vsel %vm170, %v329, 0.0
        %331 = vadd.xlane.f32.xlu0 %v330
        %v332 = vpop.xlane.xlu0 %331
        %v333 = vrot.slane %v332, 4
        %v334 = vadd.f32 %v332, %v333
        %v335 = vrot.slane %v334, 2
        %v336 = vadd.f32 %v334, %v335
        %v337 = vrot.slane %v336, 1
        %v338 = vadd.f32 %v336, %v337
        %s339 = vtos %v338
        %v340 = vmul.f32 %v329, %v329
        %v341 = vsel %vm170, %v340, 0.0
        %342 = vadd.xlane.f32.xlu0 %v341
        %v343 = vpop.xlane.xlu0 %342
        %v344 = vrot.slane %v343, 4
        %v345 = vadd.f32 %v343, %v344
        %v346 = vrot.slane %v345, 2
        %v347 = vadd.f32 %v345, %v346
        %v348 = vrot.slane %v347, 1
        %v349 = vadd.f32 %v347, %v348
        %s350 = vtos %v349
        %s351 = smul.f32 %s339, 0.001953125
        %s352 = smul.f32 %s339, %s351
        %s353 = ssub.f32 %s350, %s352
        %s354 = smul.f32 %s353, 0.0019569471
        %s355 = sadd.f32 %s354, 1e-05
        %v356 = vstv %s355
        %v357 = vrsqrt.pop %v356
        %s358 = vtos %v357
        %s359 = scalar_lea.vmem %s1, 12
        %v360 = vld [vmem:[%s359] sm:$0xf]
        %v361 = vstv %s358
        %v362 = vmul.f32 %v360, %v361
        %s363 = scalar_lea.vmem %s2, 12
        %v364 = vld [vmem:[%s363] sm:$0xf]
        %v365 = vstv %s351
        %v366 = vmul.f32 %v365, %v362
        %v367 = vsub.f32 %v364, %v366
        %369 = vset.pattern.permute.xlu0 0
        %370 = vperm.xlu0 %369, %v362
        %v371 = vpop.permute.xlu0 %370
        %v373 = vmul.f32 %v329, %v371
        %375 = vset.pattern.permute.xlu0 0
        %376 = vperm.xlu0 %375, %v367
        %v377 = vpop.permute.xlu0 %376
        %v379 = vadd.f32 %v373, %v377
        %s380 = scalar_lea.vmem %s163, 12 [#allocation2]
        %381 = vst [vmem:[%s380] sm:$0xf] %v379
        %s382 = sand.u32 %s93, 1
        %s383 = scalar_lea.sflag [#allocation3], %s382
        %s384 = sand.u32 %s93, 1
        %s385 = smul.addr %s384, 16
        %s386 = scalar_lea.vmem [#allocation2], %s385
        // Predicated region
        $region33: #{tpu_custom_call.1} parent=31 // pred_check
          %p387 = pneg %p103
        $region34: #{tpu_custom_call.1} parent=31 // pred_check_branch
          %389 = sbr.rel (%p387) target = $region36
        $region35: #{tpu_custom_call.1} parent=31 // pred_region
          %s391 = ssub.s32 256, 256
          %392 = vsyncadd %s383, %s391
          %s393 = smul.addr %s17, 4
          %s394 = smul.addr %s393, 64
          %s395 = scalar_lea.hbm %s3, %s394
          %s396 = sshll.u32 %s386, 4
          %s397 = int_to_ptr.vmem [resolvable:$true] %s396
          %402 = dma.vmem_to_hbm [thread:$0]  %s397, 256, %s395, %s383, 64, 64, 4
        $region36: #{tpu_custom_call.1} parent=31 // pred_fallthru
          _
      $region32: #{tpu_custom_call.1} parent=5 // pred_fallthru
        _
      %p403 = scmp.le.s32.totalorder 2, %s12
      // Predicated region
      $region37: #{tpu_custom_call.1} parent=5 // pred_check
        %p404 = pneg %p403
      $region38: #{tpu_custom_call.1} parent=5 // pred_check_branch
        %406 = sbr.rel (%p404) target = $region40
      $region39: #{tpu_custom_call.1} parent=5 // pred_region
        %s407 = ssub.s32 %s12, 2
        // Predicated region
        $region41: #{tpu_custom_call.1} parent=39 // pred_check
          %p408 = pneg %p109
        $region42: #{tpu_custom_call.1} parent=39 // pred_check_branch
          %410 = sbr.rel (%p408) target = $region44
        $region43: #{tpu_custom_call.1} parent=39 // pred_region
          %s411 = sand.u32 %s94, 1
          %s412 = scalar_lea.sflag [#allocation3], %s411
          %s413 = sand.u32 %s94, 1
          %s414 = smul.addr %s413, 16
          %s415 = scalar_lea.vmem [#allocation2], %s414
          %416 = dma.done %s412, 256
        $region44: #{tpu_custom_call.1} parent=39 // pred_fallthru
          _
      $region40: #{tpu_custom_call.1} parent=5 // pred_fallthru
        _
    $region6: #{tpu_custom_call.1} parent=1 // loop_footer
      %s16 = sadd.s32 1, %s12
    $region7: #{tpu_custom_call.1} parent=1 // loop_footer_branch
      %11 = sbr.rel target = $region3
    $region8: #{tpu_custom_call.1} parent=1 // loop_exit
      _
    %417 = vsyncpa [#allocation3], 1
    %s418 = scalar_lea.sflag [#allocation3], 1
    %419 = vsyncpa %s418, 1

</llo_original>
